<compile_context>
chip_gen: v6e
topology: v6e:2x2x1
jax: 0.10.0
libtpu: 0.0.40
codegen_flags: <defaults>
</compile_context>

<pallas_src>
import functools

import jax
import jax.numpy as jnp
import numpy as np
from jax.experimental import pallas as pl
from jax.experimental.pallas import tpu as pltpu


def _round_up(x, m):
    return ((x + m - 1) // m) * m


def _head_kernel(o1_ref, o2_ref, f_ref, w1_ref, w2_ref, wf_ref, b_ref, out_ref):
    """(TB,H1)@(H1,L) + (TB,H2)@(H2,L) + (TB,S*F)@(S*F,L) + b_eff -> (TB,L)."""
    dt = o1_ref.dtype  # harmonize the (tiny) weights to the activation dtype
    acc = jnp.dot(o1_ref[...], w1_ref[...].astype(dt),
                  preferred_element_type=jnp.float32)
    acc = acc + jnp.dot(o2_ref[...], w2_ref[...].astype(dt),
                        preferred_element_type=jnp.float32)
    acc = acc + jnp.dot(f_ref[...], wf_ref[...].astype(dt),
                        preferred_element_type=jnp.float32)
    out_ref[...] = (acc + b_ref[...].astype(jnp.float32)).astype(out_ref.dtype)


def prepare_rna_dna_head_params(w_feat, b_feat, w_cls, b_cls, hidden1, hidden2,
                                dtype=jnp.bfloat16):
    """Fold feature_embedding (nn.Linear(23,1)) + classifier + biases ONCE.

    w_feat: [F] or [1,F]   (nn.Linear(23,1).weight)
    b_feat: scalar         (nn.Linear(23,1).bias)
    w_cls : [L, H1+H2+S]   (PyTorch nn.Linear layout), b_cls: [L]
    Returns (w1[H1,L], w2[H2,L], wf[S*F,L]) in `dtype` and b_eff[1,L] in f32.
    """
    w_feat = jnp.asarray(w_feat, jnp.float32).reshape(-1)           # (F,)
    w_cls = jnp.asarray(w_cls, jnp.float32)                         # (L, H1+H2+S)
    b_cls = jnp.asarray(b_cls, jnp.float32)                         # (L,)
    b_feat = jnp.asarray(b_feat, jnp.float32)                       # scalar
    F = w_feat.shape[0]
    L, in_dim = w_cls.shape
    S = in_dim - hidden1 - hidden2

    w1 = w_cls[:, :hidden1].T                                       # (H1, L)
    w2 = w_cls[:, hidden1:hidden1 + hidden2].T                      # (H2, L)
    wfc = w_cls[:, hidden1 + hidden2:]                               # (L, S)
    # wf[s*F + f, l] = w_feat[f] * w_cls[l, H1+H2+s]
    wf = (wfc.T[:, None, :] * w_feat[None, :, None]).reshape(S * F, L)
    # b_eff[l] = b_cls[l] + b_feat * sum_s w_cls[l, H1+H2+s]
    b_eff = (b_cls + b_feat * jnp.sum(wfc, axis=-1)).reshape(1, L)

    return (w1.astype(dtype), w2.astype(dtype), wf.astype(dtype),
            b_eff.astype(jnp.float32))


@functools.partial(jax.jit, static_argnames=("tb_max",))
def rna_dna_inter_head(o1, o2, features, w1, w2, wf, b_eff, *, tb_max=4096):
    """Fused head of RNADNAInter.forward (logits path, use_features=True).

    o1: [B, H1], o2: [B, H2] pooled backbone outputs; features: [B, S, F].
    w1/w2/wf/b_eff come from prepare_rna_dna_head_params (done once offline).
    Activations are consumed in whatever dtype they arrive in (bf16 preferred:
    halves the dominant activation DMA bytes; accumulation is always f32).
    """
    B, H1 = o1.shape
    _, H2 = o2.shape
    SF = wf.shape[0]
    L = w1.shape[1]

    feats2d = features.reshape(B, SF)            # contiguous reshape: free

    # Tiny batches: pad the batch dim up to one sublane tile (<=7 extra rows).
    if B < 8:
        pad = 8 - B
        o1 = jnp.pad(o1, ((0, pad), (0, 0)))
        o2 = jnp.pad(o2, ((0, pad), (0, 0)))
        feats2d = jnp.pad(feats2d, ((0, pad), (0, 0)))
    Bp = o1.shape[0]

    # Batch tile: as large as possible (amortize ~0.35us/step overhead), but
    # for big batches keep >=2 (ideally >=4) grid steps so the 'parallel'
    # axis shards across both TensorCores on v7x and stays pipelined.
    TB = min(tb_max, (Bp // 8) * 8)
    if Bp >= 2048:
        min_steps = 4 if Bp >= 4096 else 2
        TB = min(TB, max(8, _round_up(pl.cdiv(Bp, min_steps), 8)))
    grid = (pl.cdiv(Bp, TB),)                    # partial last block is masked

    out = pl.pallas_call(
        _head_kernel,
        out_shape=jax.ShapeDtypeStruct((Bp, L), jnp.float32),
        grid_spec=pltpu.PrefetchScalarGridSpec(
            num_scalar_prefetch=0,
            grid=grid,
            in_specs=[
                # activations: tiled over batch; last dim == full dim -> legal
                pl.BlockSpec((TB, H1), lambda i: (i, 0)),
                pl.BlockSpec((TB, H2), lambda i: (i, 0)),
                pl.BlockSpec((TB, SF), lambda i: (i, 0)),
                # fused weights / bias: tiny, resident across the whole grid
                pl.BlockSpec((H1, L), lambda i: (0, 0)),
                pl.BlockSpec((H2, L), lambda i: (0, 0)),
                pl.BlockSpec((SF, L), lambda i: (0, 0)),
                pl.BlockSpec((1, L), lambda i: (0, 0)),
            ],
            # only the L useful columns are written back (masked stores);
            # avoids a 128-wide padded f32 output slab.
            out_specs=pl.BlockSpec((TB, L), lambda i: (i, 0)),
        ),
        compiler_params=pltpu.CompilerParams(
            dimension_semantics=("parallel",),   # megacore-shardable on v7x
        ),
    )(o1, o2, feats2d, w1, w2, wf, b_eff)

    return out[:B]


# TODO(synk): the omics1/omics2 transformer backbones and the optional loss
# branches (MSE / CrossEntropy / BCEWithLogits on labels) are external to this
# kernel; this reproduces the logits path of forward() when labels is None.


if __name__ == "__main__":
    # small, module-consistent shapes
    B = 2            # batch
    H1 = 32          # omics1_config.hidden_size
    H2 = 32          # omics2_config.hidden_size
    S = 8            # feature groups (the "+ 8" in the classifier in_dim)
    F = 23           # feature_embedding = nn.Linear(23, 1)
    L = 2            # num_labels

    key = jax.random.PRNGKey(0)
    k1, k2, k3, k4, k5, k6 = jax.random.split(key, 6)

    # "pooled outputs" of the two backbones (backbones themselves are external)
    omics1_out_f32 = jax.random.normal(k1, (B, H1), jnp.float32)
    omics2_out_f32 = jax.random.normal(k2, (B, H2), jnp.float32)
    features_f32 = jax.random.normal(k3, (B, S, F), jnp.float32)

    # deterministic synthetic parameters
    w_feat = jax.random.normal(k4, (F,), jnp.float32) * 0.1     # Linear(23,1).weight
    b_feat = jnp.float32(0.05)                                  # Linear(23,1).bias
    w_cls = jax.random.normal(k5, (L, H1 + H2 + S), jnp.float32) * 0.1
    b_cls = jax.random.normal(k6, (L,), jnp.float32) * 0.01

    # Fold the head parameters once (offline) into MXU-ready bf16 operands.
    params = prepare_rna_dna_head_params(w_feat, b_feat, w_cls, b_cls, H1, H2,
                                         dtype=jnp.bfloat16)

    # Backbone activations arrive in bf16: kernel reads half the bytes.
    o1 = omics1_out_f32.astype(jnp.bfloat16)
    o2 = omics2_out_f32.astype(jnp.bfloat16)
    feats = features_f32.astype(jnp.bfloat16)

    logits = rna_dna_inter_head(o1, o2, feats, *params)
    logits = jax.block_until_ready(logits)

    # pure-JAX f32 reference mirroring the PyTorch forward (logits path)
    feat_ref = jnp.einsum('bsf,f->bs', features_f32, w_feat,
                          precision=jax.lax.Precision.HIGHEST) + b_feat
    final_input = jnp.concatenate([omics1_out_f32, omics2_out_f32, feat_ref],
                                  axis=-1)
    ref_logits = jnp.dot(final_input, w_cls.T,
                         precision=jax.lax.Precision.HIGHEST) + b_cls

    # bf16 MXU operands -> ~1e-3 abs error at these magnitudes (K ~ 250);
    # 2e-2 tolerance keeps a comfortable margin while exercising the fast path.
    np.testing.assert_allclose(np.asarray(logits, np.float32),
                               np.asarray(ref_logits), rtol=2e-2, atol=2e-2)
    print("KERNEL_OK")
</pallas_src>

<mosaic_0001>
module attributes {stable_mosaic.version = 11 : i64} {
  func.func @_head_kernel(%arg0: i32, %arg1: memref<8x32xbf16, #tpu.memory_space<vmem>>, %arg2: memref<8x32xbf16, #tpu.memory_space<vmem>>, %arg3: memref<8x184xbf16, #tpu.memory_space<vmem>>, %arg4: memref<32x2xbf16, #tpu.memory_space<vmem>>, %arg5: memref<32x2xbf16, #tpu.memory_space<vmem>>, %arg6: memref<184x2xbf16, #tpu.memory_space<vmem>>, %arg7: memref<1x2xf32, #tpu.memory_space<vmem>>, %arg8: memref<8x2xf32, #tpu.memory_space<vmem>>) attributes {dimension_semantics = [#tpu.dimension_semantics<parallel>], iteration_bounds = array<i64: 1>, scalar_prefetch = 0 : i64, scratch_operands = 0 : i64, tpu.core_type = #tpu.core_type<tc>, window_params = [{transform_indices = @transform_0, window_bounds = array<i64: 8, 32>}, {transform_indices = @transform_1, window_bounds = array<i64: 8, 32>}, {transform_indices = @transform_2, window_bounds = array<i64: 8, 184>}, {pipeline_mode = #tpu.pipeline_mode<synchronous>, transform_indices = @transform_3, window_bounds = array<i64: 32, 2>}, {pipeline_mode = #tpu.pipeline_mode<synchronous>, transform_indices = @transform_4, window_bounds = array<i64: 32, 2>}, {pipeline_mode = #tpu.pipeline_mode<synchronous>, transform_indices = @transform_5, window_bounds = array<i64: 184, 2>}, {pipeline_mode = #tpu.pipeline_mode<synchronous>, transform_indices = @transform_6, window_bounds = array<i64: 1, 2>}, {transform_indices = @transform_7, window_bounds = array<i64: 8, 2>}]} {
    %c0 = arith.constant 0 : index
    %c0_0 = arith.constant 0 : index
    %0 = vector.load %arg1[%c0, %c0_0] : memref<8x32xbf16, #tpu.memory_space<vmem>>, vector<8x32xbf16>
    %c0_1 = arith.constant 0 : index
    %c0_2 = arith.constant 0 : index
    %1 = vector.load %arg4[%c0_1, %c0_2] : memref<32x2xbf16, #tpu.memory_space<vmem>>, vector<32x2xbf16>
    %cst = arith.constant dense<0.000000e+00> : vector<8x2xf32>
    %2 = tpu.matmul %0, %1, %cst {dimension_numbers = #tpu.dot_dimension_numbers<[1], [0], [0], [1], [0, 0, 1, 1], [], []>} : vector<8x32xbf16>, vector<32x2xbf16>, vector<8x2xf32> -> vector<8x2xf32>
    %c0_3 = arith.constant 0 : index
    %c0_4 = arith.constant 0 : index
    %3 = vector.load %arg2[%c0_3, %c0_4] : memref<8x32xbf16, #tpu.memory_space<vmem>>, vector<8x32xbf16>
    %c0_5 = arith.constant 0 : index
    %c0_6 = arith.constant 0 : index
    %4 = vector.load %arg5[%c0_5, %c0_6] : memref<32x2xbf16, #tpu.memory_space<vmem>>, vector<32x2xbf16>
    %cst_7 = arith.constant dense<0.000000e+00> : vector<8x2xf32>
    %5 = tpu.matmul %3, %4, %cst_7 {dimension_numbers = #tpu.dot_dimension_numbers<[1], [0], [0], [1], [0, 0, 1, 1], [], []>} : vector<8x32xbf16>, vector<32x2xbf16>, vector<8x2xf32> -> vector<8x2xf32>
    %6 = arith.addf %2, %5 : vector<8x2xf32>
    %c0_8 = arith.constant 0 : index
    %c0_9 = arith.constant 0 : index
    %7 = vector.load %arg3[%c0_8, %c0_9] : memref<8x184xbf16, #tpu.memory_space<vmem>>, vector<8x184xbf16>
    %c0_10 = arith.constant 0 : index
    %c0_11 = arith.constant 0 : index
    %8 = vector.load %arg6[%c0_10, %c0_11] : memref<184x2xbf16, #tpu.memory_space<vmem>>, vector<184x2xbf16>
    %cst_12 = arith.constant dense<0.000000e+00> : vector<8x2xf32>
    %9 = tpu.matmul %7, %8, %cst_12 {dimension_numbers = #tpu.dot_dimension_numbers<[1], [0], [0], [1], [0, 0, 1, 1], [], []>} : vector<8x184xbf16>, vector<184x2xbf16>, vector<8x2xf32> -> vector<8x2xf32>
    %10 = arith.addf %6, %9 : vector<8x2xf32>
    %c0_13 = arith.constant 0 : index
    %c0_14 = arith.constant 0 : index
    %11 = vector.load %arg7[%c0_13, %c0_14] : memref<1x2xf32, #tpu.memory_space<vmem>>, vector<1x2xf32>
    %12 = vector.broadcast %11 : vector<1x2xf32> to vector<8x2xf32>
    %13 = arith.addf %10, %12 : vector<8x2xf32>
    %c0_15 = arith.constant 0 : index
    %c0_16 = arith.constant 0 : index
    %14 = vector.load %arg8[%c0_15, %c0_16] : memref<8x2xf32, #tpu.memory_space<vmem>>, vector<8x2xf32>
    tpu.vector_store %arg8[%c0_15, %c0_16], %13 {strides = array<i32>} : memref<8x2xf32, #tpu.memory_space<vmem>>, vector<8x2xf32>,
    return
  }
  func.func @transform_0(%arg0: i32) -> (i32, i32) {
    %c0_i32 = arith.constant 0 : i32
    %c0_i32_0 = arith.constant 0 : i32
    return %arg0, %c0_i32 : i32, i32
  }
  func.func @transform_1(%arg0: i32) -> (i32, i32) {
    %c0_i32 = arith.constant 0 : i32
    %c0_i32_0 = arith.constant 0 : i32
    return %arg0, %c0_i32 : i32, i32
  }
  func.func @transform_2(%arg0: i32) -> (i32, i32) {
    %c0_i32 = arith.constant 0 : i32
    %c0_i32_0 = arith.constant 0 : i32
    return %arg0, %c0_i32 : i32, i32
  }
  func.func @transform_3(%arg0: i32) -> (i32, i32) {
    %c0_i32 = arith.constant 0 : i32
    %c0_i32_0 = arith.constant 0 : i32
    %c0_i32_1 = arith.constant 0 : i32
    return %c0_i32, %c0_i32_0 : i32, i32
  }
  func.func @transform_4(%arg0: i32) -> (i32, i32) {
    %c0_i32 = arith.constant 0 : i32
    %c0_i32_0 = arith.constant 0 : i32
    %c0_i32_1 = arith.constant 0 : i32
    return %c0_i32, %c0_i32_0 : i32, i32
  }
  func.func @transform_5(%arg0: i32) -> (i32, i32) {
    %c0_i32 = arith.constant 0 : i32
    %c0_i32_0 = arith.constant 0 : i32
    %c0_i32_1 = arith.constant 0 : i32
    return %c0_i32, %c0_i32_0 : i32, i32
  }
  func.func @transform_6(%arg0: i32) -> (i32, i32) {
    %c0_i32 = arith.constant 0 : i32
    %c0_i32_0 = arith.constant 0 : i32
    %c0_i32_1 = arith.constant 0 : i32
    return %c0_i32, %c0_i32_0 : i32, i32
  }
  func.func @transform_7(%arg0: i32) -> (i32, i32) {
    %c0_i32 = arith.constant 0 : i32
    %c0_i32_0 = arith.constant 0 : i32
    return %arg0, %c0_i32 : i32, i32
  }
}

</mosaic_0001>

<llo_original>
// kernel: rna_dna_inter_head.1
$region0: #{rna_dna_inter_head.1}
  #allocation0 [shape = 'u32[]', space=smem, size = 0x4, offset = 0x4, fixed_abs, tag = 'smem constant byte address 0x4 - core index']
  #allocation1 [shape = 'u32[144,128]{1,0:T(1,128)}', space=vmem, size = 0x12000, scoped, tag = 'internal scratch']
  %s0 = inlined_call_operand.vmem [shape: bf16[8,32], index: 0, kind: input, shape index: {}]
  %s1 = inlined_call_operand.vmem [shape: bf16[8,32], index: 1, kind: input, shape index: {}]
  %s2 = inlined_call_operand.vmem [shape: bf16[8,184], index: 2, kind: input, shape index: {}]
  %s3 = inlined_call_operand.vmem [shape: bf16[32,2], index: 3, kind: input, shape index: {}]
  %s4 = inlined_call_operand.vmem [shape: bf16[32,2], index: 4, kind: input, shape index: {}]
  %s5 = inlined_call_operand.vmem [shape: bf16[184,2], index: 5, kind: input, shape index: {}]
  %s6 = inlined_call_operand.vmem [shape: f32[1,2], index: 6, kind: input, shape index: {}]
  %s7 = inlined_call_operand.vmem [shape: f32[8,2], index: 7, kind: output, shape index: {}]
  %s8 = sld [smem:[#allocation0]]
  $region38: #{rna_dna_inter_head.1} parent=0
    _
  %s10 = ssub.s32 1, %s8
  %s11 = scalar_select 0, %s10, %s8
  // Predicated region
  $region2: #{rna_dna_inter_head.1} parent=0 // pred_check
    _
  $region3: #{rna_dna_inter_head.1} parent=0 // pred_check_branch
    %13 = sbr.rel (0) target = $region5
  $region4: #{rna_dna_inter_head.1} parent=0 // pred_region
    _
  $region5: #{rna_dna_inter_head.1} parent=0 // pred_fallthru
    _
  // Predicated region
  $region6: #{rna_dna_inter_head.1} parent=0 // pred_check
    _
  $region7: #{rna_dna_inter_head.1} parent=0 // pred_check_branch
    %15 = sbr.rel (0) target = $region9
  $region8: #{rna_dna_inter_head.1} parent=0 // pred_region
    _
  $region9: #{rna_dna_inter_head.1} parent=0 // pred_fallthru
    _
  // Predicated region
  $region10: #{rna_dna_inter_head.1} parent=0 // pred_check
    _
  $region11: #{rna_dna_inter_head.1} parent=0 // pred_check_branch
    %17 = sbr.rel (0) target = $region13
  $region12: #{rna_dna_inter_head.1} parent=0 // pred_region
    _
  $region13: #{rna_dna_inter_head.1} parent=0 // pred_fallthru
    _
  // Predicated region
  $region14: #{rna_dna_inter_head.1} parent=0 // pred_check
    _
  $region15: #{rna_dna_inter_head.1} parent=0 // pred_check_branch
    %19 = sbr.rel (0) target = $region17
  $region16: #{rna_dna_inter_head.1} parent=0 // pred_region
    _
  $region17: #{rna_dna_inter_head.1} parent=0 // pred_fallthru
    _
  // Predicated region
  $region18: #{rna_dna_inter_head.1} parent=0 // pred_check
    _
  $region19: #{rna_dna_inter_head.1} parent=0 // pred_check_branch
    %21 = sbr.rel (0) target = $region21
  $region20: #{rna_dna_inter_head.1} parent=0 // pred_region
    _
  $region21: #{rna_dna_inter_head.1} parent=0 // pred_fallthru
    _
  // Predicated region
  $region22: #{rna_dna_inter_head.1} parent=0 // pred_check
    _
  $region23: #{rna_dna_inter_head.1} parent=0 // pred_check_branch
    %23 = sbr.rel (0) target = $region25
  $region24: #{rna_dna_inter_head.1} parent=0 // pred_region
    _
  $region25: #{rna_dna_inter_head.1} parent=0 // pred_fallthru
    _
  // Predicated region
  $region26: #{rna_dna_inter_head.1} parent=0 // pred_check
    _
  $region27: #{rna_dna_inter_head.1} parent=0 // pred_check_branch
    %25 = sbr.rel (0) target = $region29
  $region28: #{rna_dna_inter_head.1} parent=0 // pred_region
    _
  $region29: #{rna_dna_inter_head.1} parent=0 // pred_fallthru
    _
  %v27 = vld [vmem:[%s0] sm:$0xf]
  %v28 = vld [vmem:[%s3] sm:$0xf]
  %v29 = vld [vmem:[%s3 + $0x4] sm:$0xf]
  %v30 = vld [vmem:[%s3 + $0x8] sm:$0xf]
  %v31 = vld [vmem:[%s3 + $0xc] sm:$0xf]
  %v32 = vld [vmem:[%s1] sm:$0xf]
  %v33 = vld [vmem:[%s4] sm:$0xf]
  %v34 = vld [vmem:[%s4 + $0x4] sm:$0xf]
  %v35 = vld [vmem:[%s4 + $0x8] sm:$0xf]
  %v36 = vld [vmem:[%s4 + $0xc] sm:$0xf]
  %v41 = vunpack.c.l.b16 %v33
  %v42 = vunpack.c.l.b16 %v34
  %v43 = vunpack.c.l.b16 %v35
  %v44 = vunpack.c.l.b16 %v36
  %v45 = vpack.c.b16 %v42, %v41
  %v46 = vpack.c.b16 %v44, %v43
  %vm49 = vcmask 261120
  %v51 = vsel %vm49, %v32, 0
  %53 = vmatprep.subr.bf16.mxu0 0
  %54 = vmatpush1.bf16.msra.mxu0 0
  %55 = vmatprep.subr.bf16.mxu0 0
  %56 = vmatpush1.bf16.msra.mxu0 0
  %57 = vmatprep.subr.bf16.mxu0 0
  %58 = vmatpush1.bf16.msra.mxu0 0
  %59 = vmatprep.subr.bf16.mxu0 0
  %60 = vmatpush1.bf16.msra.mxu0 0
  %61 = vmatprep.subr.bf16.mxu0 0
  %62 = vmatpush1.bf16.msra.mxu0 0
  %63 = vmatprep.subr.bf16.mxu0 0
  %64 = vmatpush1.bf16.msra.mxu0 0
  %65 = vmatprep.subr.bf16.mxu0 0
  %66 = vmatpush1.bf16.msra.mxu0 %v46
  %67 = vmatprep.subr.bf16.mxu0 0
  %68 = vmatpush1.bf16.msra.mxu0 %v45
  %69 = vmatprep.subr.bf16.mxu0 0
  %70 = vmatpush2.bf16.msra.mxu0 0
  %71 = vmatprep.subr.bf16.mxu0 0
  %72 = vmatpush2.bf16.msra.mxu0 0
  %73 = vmatprep.subr.bf16.mxu0 0
  %74 = vmatpush2.bf16.msra.mxu0 0
  %75 = vmatprep.subr.bf16.mxu0 0
  %76 = vmatpush2.bf16.msra.mxu0 0
  %77 = vmatprep.subr.bf16.mxu0 0
  %78 = vmatpush2.bf16.msra.mxu0 0
  %79 = vmatprep.subr.bf16.mxu0 0
  %80 = vmatpush2.bf16.msra.mxu0 0
  %81 = vmatprep.subr.bf16.mxu0 0
  %82 = vmatpush2.bf16.msra.mxu0 0
  %83 = vmatprep.subr.bf16.mxu0 0
  %84 = vmatpush2.bf16.msra.mxu0 0
  %85 = vmatprep.mubr.bf16.mxu0 0
  %86 = vmatmul.mubr.bf16.gmra.mxu0 %v51
  %v87 = vpop.f32.mrf.mxu0
  %v88 = vadd.f32 0.0, %v87
  %v89 = vpop.f32.mrf.mxu0
  %v90 = vpop.f32.mrf.mxu0
  %v91 = vpop.f32.mrf.mxu0
  %92 = vdwg.mxu0
  %v97 = vunpack.c.l.b16 %v28
  %v98 = vunpack.c.l.b16 %v29
  %v99 = vunpack.c.l.b16 %v30
  %v100 = vunpack.c.l.b16 %v31
  %v101 = vpack.c.b16 %v98, %v97
  %v102 = vpack.c.b16 %v100, %v99
  %v106 = vsel %vm49, %v27, 0
  %108 = vmatprep.subr.bf16.mxu0 0
  %109 = vmatpush1.bf16.msra.mxu0 0
  %110 = vmatprep.subr.bf16.mxu0 0
  %111 = vmatpush1.bf16.msra.mxu0 0
  %112 = vmatprep.subr.bf16.mxu0 0
  %113 = vmatpush1.bf16.msra.mxu0 0
  %114 = vmatprep.subr.bf16.mxu0 0
  %115 = vmatpush1.bf16.msra.mxu0 0
  %116 = vmatprep.subr.bf16.mxu0 0
  %117 = vmatpush1.bf16.msra.mxu0 0
  %118 = vmatprep.subr.bf16.mxu0 0
  %119 = vmatpush1.bf16.msra.mxu0 0
  %120 = vmatprep.subr.bf16.mxu0 0
  %121 = vmatpush1.bf16.msra.mxu0 %v102
  %122 = vmatprep.subr.bf16.mxu0 0
  %123 = vmatpush1.bf16.msra.mxu0 %v101
  %124 = vmatprep.subr.bf16.mxu0 0
  %125 = vmatpush2.bf16.msra.mxu0 0
  %126 = vmatprep.subr.bf16.mxu0 0
  %127 = vmatpush2.bf16.msra.mxu0 0
  %128 = vmatprep.subr.bf16.mxu0 0
  %129 = vmatpush2.bf16.msra.mxu0 0
  %130 = vmatprep.subr.bf16.mxu0 0
  %131 = vmatpush2.bf16.msra.mxu0 0
  %132 = vmatprep.subr.bf16.mxu0 0
  %133 = vmatpush2.bf16.msra.mxu0 0
  %134 = vmatprep.subr.bf16.mxu0 0
  %135 = vmatpush2.bf16.msra.mxu0 0
  %136 = vmatprep.subr.bf16.mxu0 0
  %137 = vmatpush2.bf16.msra.mxu0 0
  %138 = vmatprep.subr.bf16.mxu0 0
  %139 = vmatpush2.bf16.msra.mxu0 0
  %140 = vmatprep.mubr.bf16.mxu0 0
  %141 = vmatmul.mubr.bf16.gmra.mxu0 %v106
  %v142 = vpop.f32.mrf.mxu0
  %v143 = vadd.f32 %v88, %v142
  %v144 = vpop.f32.mrf.mxu0
  %v145 = vpop.f32.mrf.mxu0
  %v146 = vpop.f32.mrf.mxu0
  %147 = vdwg.mxu0
  %v148 = vld [vmem:[%s2] sm:$0xff]
  %v149 = vld [vmem:[%s5] sm:$0xf]
  %v150 = vld [vmem:[%s5 + $0x4] sm:$0xf]
  %v151 = vld [vmem:[%s5 + $0x8] sm:$0xf]
  %v152 = vld [vmem:[%s5 + $0xc] sm:$0xf]
  %v153 = vld [vmem:[%s5 + $0x10] sm:$0xf]
  %v154 = vld [vmem:[%s5 + $0x14] sm:$0xf]
  %v155 = vld [vmem:[%s5 + $0x18] sm:$0xf]
  %v156 = vld [vmem:[%s5 + $0x1c] sm:$0xf]
  %v157 = vld [vmem:[%s5 + $0x20] sm:$0xf]
  %v158 = vld [vmem:[%s5 + $0x24] sm:$0xf]
  %v159 = vld [vmem:[%s5 + $0x28] sm:$0xf]
  %v160 = vld [vmem:[%s5 + $0x2c] sm:$0xf]
  %v161 = vld [vmem:[%s5 + $0x30] sm:$0xf]
  %v162 = vld [vmem:[%s5 + $0x34] sm:$0xf]
  %v163 = vld [vmem:[%s5 + $0x38] sm:$0xf]
  %v164 = vld [vmem:[%s5 + $0x3c] sm:$0xf]
  %v165 = vld [vmem:[%s5 + $0x40] sm:$0xf]
  %v166 = vld [vmem:[%s5 + $0x44] sm:$0xf]
  %v167 = vld [vmem:[%s5 + $0x48] sm:$0xf]
  %v168 = vld [vmem:[%s5 + $0x4c] sm:$0xf]
  %v169 = vld [vmem:[%s5 + $0x50] sm:$0xf]
  %v170 = vld [vmem:[%s5 + $0x54] sm:$0xf]
  %v171 = vld [vmem:[%s5 + $0x58] sm:$0xf]
  %v173 = vunpack.c.l.b16 %v148
  %v174 = vunpack.c.h.b16 %v148
  %v175 = vpack.c.b16 %v173, %v173
  %v176 = vpack.c.b16 %v174, %v174
  %v201 = vunpack.c.l.b16 %v149
  %v202 = vunpack.c.l.b16 %v150
  %v203 = vunpack.c.l.b16 %v151
  %v204 = vunpack.c.l.b16 %v152
  %v205 = vunpack.c.l.b16 %v153
  %v206 = vunpack.c.l.b16 %v154
  %v207 = vunpack.c.l.b16 %v155
  %v208 = vunpack.c.l.b16 %v156
  %v209 = vunpack.c.l.b16 %v157
  %v210 = vunpack.c.l.b16 %v158
  %v211 = vunpack.c.l.b16 %v159
  %v212 = vunpack.c.l.b16 %v160
  %v213 = vunpack.c.l.b16 %v161
  %v214 = vunpack.c.l.b16 %v162
  %v215 = vunpack.c.l.b16 %v163
  %v216 = vunpack.c.l.b16 %v164
  %v217 = vunpack.c.l.b16 %v165
  %v218 = vunpack.c.l.b16 %v166
  %v219 = vunpack.c.l.b16 %v167
  %v220 = vunpack.c.l.b16 %v168
  %v221 = vunpack.c.l.b16 %v169
  %v222 = vunpack.c.l.b16 %v170
  %v223 = vunpack.c.l.b16 %v171
  %v224 = vpack.c.b16 %v202, %v201
  %v225 = vpack.c.b16 %v204, %v203
  %v226 = vpack.c.b16 %v206, %v205
  %v227 = vpack.c.b16 %v208, %v207
  %v228 = vpack.c.b16 %v210, %v209
  %v229 = vpack.c.b16 %v212, %v211
  %v230 = vpack.c.b16 %v214, %v213
  %v231 = vpack.c.b16 %v216, %v215
  %v232 = vpack.c.b16 %v218, %v217
  %v233 = vpack.c.b16 %v220, %v219
  %v234 = vpack.c.b16 %v222, %v221
  %v235 = vpack.c.b16 %v223, %v223
  %vm247 = vcmask 457728
  %v249 = vsel %vm247, %v176, 0
  %vm251 = vcmask 1043456
  %v253 = vsel %vm251, %v235, 0
  %255 = vmatprep.subr.bf16.mxu0 0
  %256 = vmatpush1.bf16.msra.mxu0 %v231
  %257 = vmatprep.subr.bf16.mxu0 0
  %258 = vmatpush1.bf16.msra.mxu0 %v230
  %259 = vmatprep.subr.bf16.mxu0 0
  %260 = vmatpush1.bf16.msra.mxu0 %v229
  %261 = vmatprep.subr.bf16.mxu0 0
  %262 = vmatpush1.bf16.msra.mxu0 %v228
  %263 = vmatprep.subr.bf16.mxu0 0
  %264 = vmatpush1.bf16.msra.mxu0 %v227
  %265 = vmatprep.subr.bf16.mxu0 0
  %266 = vmatpush1.bf16.msra.mxu0 %v226
  %267 = vmatprep.subr.bf16.mxu0 0
  %268 = vmatpush1.bf16.msra.mxu0 %v225
  %269 = vmatprep.subr.bf16.mxu0 0
  %270 = vmatpush1.bf16.msra.mxu0 %v224
  %271 = vmatprep.subr.bf16.mxu0 0
  %272 = vmatpush2.bf16.msra.mxu0 0
  %273 = vmatprep.subr.bf16.mxu0 0
  %274 = vmatpush2.bf16.msra.mxu0 0
  %275 = vmatprep.subr.bf16.mxu0 0
  %276 = vmatpush2.bf16.msra.mxu0 0
  %277 = vmatprep.subr.bf16.mxu0 0
  %278 = vmatpush2.bf16.msra.mxu0 0
  %279 = vmatprep.subr.bf16.mxu0 0
  %280 = vmatpush2.bf16.msra.mxu0 %v253
  %281 = vmatprep.subr.bf16.mxu0 0
  %282 = vmatpush2.bf16.msra.mxu0 %v234
  %283 = vmatprep.subr.bf16.mxu0 0
  %284 = vmatpush2.bf16.msra.mxu0 %v233
  %285 = vmatprep.subr.bf16.mxu0 0
  %286 = vmatpush2.bf16.msra.mxu0 %v232
  %287 = vmatprep.mubr.bf16.mxu0 %v249
  %288 = vmatmul.mubr.bf16.gmra.mxu0 %v175
  %v289 = vpop.f32.mrf.mxu0
  %v290 = vadd.f32 0.0, %v289
  %v291 = vpop.f32.mrf.mxu0
  %v292 = vpop.f32.mrf.mxu0
  %v293 = vpop.f32.mrf.mxu0
  %294 = vdwg.mxu0
  %v295 = vadd.f32 %v143, %v290
  %v296 = vld [vmem:[%s6] sm:$0x1]
  %v298 = vlaneseq
  %v299 = vshrl.u32 %v298, 7
  %v300 = vsub.s32 0, %v299
  %v301 = vrot.slane %v296, %v300
  %v303 = vadd.f32 %v295, %v301
  %vm304 = vcmask 15360
  %305 = vst.msk [vmem:[%s7] sm:$0xff] %vm304, %v303
  // Predicated region
  $region30: #{rna_dna_inter_head.1} parent=0 // pred_check
    _
  $region31: #{rna_dna_inter_head.1} parent=0 // pred_check_branch
    %307 = sbr.rel (0) target = $region33
  $region32: #{rna_dna_inter_head.1} parent=0 // pred_region
    _
  $region33: #{rna_dna_inter_head.1} parent=0 // pred_fallthru
    _
  // Predicated region
  $region34: #{rna_dna_inter_head.1} parent=0 // pred_check
    _
  $region35: #{rna_dna_inter_head.1} parent=0 // pred_check_branch
    %309 = sbr.rel (0) target = $region37
  $region36: #{rna_dna_inter_head.1} parent=0 // pred_region
    _
  $region37: #{rna_dna_inter_head.1} parent=0 // pred_fallthru
    _

</llo_original>
